<compile_context>
chip_gen: v5e
topology: v5e:2x2
jax: 0.10.0
libtpu: 0.0.40
codegen_flags: <defaults>
</compile_context>

<pallas_src>
import math
import functools

import jax
import jax.numpy as jnp
from jax.experimental import pallas as pl
from jax.experimental.pallas import tpu as pltpu

# ----------------------------- config -----------------------------
D_MODEL = 32
N_HEADS = 4
D_HEAD = D_MODEL // N_HEADS
D_FF = 64
BATCH = 2
SEQ = 8
LN_EPS = 1e-5  # nn.LayerNorm default (biased variance, eps inside sqrt)

# Rows of the packed (8, 128) parameter-vector slab.
_ROW_LN1_G, _ROW_LN1_B, _ROW_BQKV, _ROW_BO = 0, 1, 2, 3
_ROW_LN2_G, _ROW_LN2_B, _ROW_B1, _ROW_B2 = 4, 5, 6, 7


# ------------------------- fused Pallas kernel -------------------------
def _encoder_layer_kernel(x_ref, bias_ref, vec_ref,
                          wqkv_ref, wo_ref, w1_ref, w2_ref,
                          o_ref, *, n_heads, d_head, d_model, d_ff, eps):
    x = x_ref[...]                       # (N, D) f32, N = B*S, all-resident
    bias = bias_ref[...]                 # (N, N) f32 additive attention bias

    # Packed small parameters: static row/lane slices of one (8, 128) slab.
    ln1_g = vec_ref[_ROW_LN1_G:_ROW_LN1_G + 1, 0:d_model]        # (1, D)
    ln1_b = vec_ref[_ROW_LN1_B:_ROW_LN1_B + 1, 0:d_model]
    bqkv = vec_ref[_ROW_BQKV:_ROW_BQKV + 1, 0:3 * d_model]       # (1, 3D)
    bo = vec_ref[_ROW_BO:_ROW_BO + 1, 0:d_model]
    ln2_g = vec_ref[_ROW_LN2_G:_ROW_LN2_G + 1, 0:d_model]
    ln2_b = vec_ref[_ROW_LN2_B:_ROW_LN2_B + 1, 0:d_model]
    b1 = vec_ref[_ROW_B1:_ROW_B1 + 1, 0:d_ff]                    # (1, D_FF)
    b2 = vec_ref[_ROW_B2:_ROW_B2 + 1, 0:d_model]

    def layer_norm(v, g, b):             # f32 (biased variance, nn.LayerNorm)
        mean = jnp.mean(v, axis=-1, keepdims=True)
        var = jnp.mean((v - mean) ** 2, axis=-1, keepdims=True)
        return (v - mean) * jax.lax.rsqrt(var + eps) * g + b

    # ---------- sublayer 1: pre-norm multi-head self-attention ----------
    n1 = layer_norm(x, ln1_g, ln1_b).astype(jnp.bfloat16)
    # Fused QKV projection: one (N, D) x (D, 3D) bf16 MXU matmul, f32 acc.
    qkv = jnp.dot(n1, wqkv_ref[...],
                  preferred_element_type=jnp.float32) + bqkv     # (N, 3D) f32
    qkv_bf = qkv.astype(jnp.bfloat16)    # cast once; sliced per head below

    scale = 1.0 / math.sqrt(d_head)
    head_outs = []
    for h in range(n_heads):             # unrolled, static lane slices
        lo = h * d_head
        q_h = qkv_bf[:, lo:lo + d_head]                              # (N, Dh)
        k_h = qkv_bf[:, d_model + lo:d_model + lo + d_head]          # (N, Dh)
        v_h = qkv_bf[:, 2 * d_model + lo:2 * d_model + lo + d_head]  # (N, Dh)

        s = jax.lax.dot_general(
            q_h, k_h, dimension_numbers=(((1,), (1,)), ((), ())),
            preferred_element_type=jnp.float32) * scale + bias      # (N, N)
        s = s - jnp.max(s, axis=-1, keepdims=True)
        p = jnp.exp(s)
        # Deliberate precision trade: EUP approx reciprocal for the softmax
        # denominator (covered by the 5e-2 tolerance vs the f32 reference).
        p = p * pl.reciprocal(jnp.sum(p, axis=-1, keepdims=True), approx=True)

        head_outs.append(jnp.dot(p.astype(jnp.bfloat16), v_h,
                                 preferred_element_type=jnp.float32))  # (N, Dh)

    # Single K=32 output projection instead of 4 accumulating K=8 matmuls.
    o_cat = jnp.concatenate(head_outs, axis=-1).astype(jnp.bfloat16)   # (N, D)
    attn = jnp.dot(o_cat, wo_ref[...],
                   preferred_element_type=jnp.float32) + bo
    x1 = x + attn                        # residual (dropout = identity, eval)

    # ---------- sublayer 2: pre-norm position-wise feed-forward ----------
    n2 = layer_norm(x1, ln2_g, ln2_b).astype(jnp.bfloat16)
    hid = jnp.maximum(jnp.dot(n2, w1_ref[...],
                              preferred_element_type=jnp.float32) + b1, 0.0)
    ff = jnp.dot(hid.astype(jnp.bfloat16), w2_ref[...],
                 preferred_element_type=jnp.float32) + b2
    o_ref[...] = (x1 + ff).astype(o_ref.dtype)


# --------------------------- wrapper ---------------------------
def _mask_to_bias(mask, batch, seq):
    """mask: (B, 1, S) f32 (1 = keep) -> block-diagonal (B*S, B*S) add-bias."""
    n = batch * seq
    key_bias = jnp.where(mask.reshape(1, n) > 0.0, 0.0, -1e9)      # (1, N)
    bi = jnp.arange(n, dtype=jnp.int32) // seq
    same_batch = bi[:, None] == bi[None, :]                        # (N, N)
    return jnp.where(same_batch, key_bias, -1e9).astype(jnp.float32)


def encoder_layer(x, mask, packed):
    """x: (B, S, D) f32, mask: (B, 1, S) f32. `packed` from pack_params()."""
    B, S, D = x.shape
    N = B * S
    x_flat = x.reshape(N, D)                       # contiguous, metadata-only
    bias = _mask_to_bias(mask, B, S)               # (N, N) f32

    kernel = functools.partial(_encoder_layer_kernel,
                               n_heads=N_HEADS, d_head=D_HEAD,
                               d_model=D_MODEL, d_ff=D_FF, eps=LN_EPS)

    vmem = pl.BlockSpec(memory_space=pltpu.MemorySpace.VMEM)       # whole array
    y = pl.pallas_call(
        kernel,
        out_shape=jax.ShapeDtypeStruct((N, D), jnp.float32),
        in_specs=[vmem] * 7,
        out_specs=vmem,
    )(x_flat, bias, packed["vec"],
      packed["wqkv"], packed["wo"], packed["w1"], packed["w2"])
    return y.reshape(B, S, D)


# ---------------- one-time parameter packing (outside jit) ----------------
def pack_params(p):
    """Fuse Wq/Wk/Wv, pre-cast matmul weights to bf16, and pack the eight tiny
    bias / LayerNorm vectors into one (8, 128) f32 slab (single DMA)."""
    D, F = D_MODEL, D_FF
    wqkv = jnp.concatenate([p["wq"], p["wk"], p["wv"]], axis=1)    # (D, 3D)
    vec = jnp.zeros((8, 128), jnp.float32)
    vec = vec.at[_ROW_LN1_G, :D].set(p["ln1_g"])
    vec = vec.at[_ROW_LN1_B, :D].set(p["ln1_b"])
    vec = vec.at[_ROW_BQKV, :3 * D].set(jnp.concatenate([p["bq"], p["bk"], p["bv"]]))
    vec = vec.at[_ROW_BO, :D].set(p["bo"])
    vec = vec.at[_ROW_LN2_G, :D].set(p["ln2_g"])
    vec = vec.at[_ROW_LN2_B, :D].set(p["ln2_b"])
    vec = vec.at[_ROW_B1, :F].set(p["b1"])
    vec = vec.at[_ROW_B2, :D].set(p["b2"])
    return {
        "wqkv": wqkv.astype(jnp.bfloat16),
        "wo": p["wo"].astype(jnp.bfloat16),
        "w1": p["w1"].astype(jnp.bfloat16),
        "w2": p["w2"].astype(jnp.bfloat16),
        "vec": vec,
    }


# ----------------------- pure-JAX f32 reference -----------------------
def encoder_layer_ref(x, mask, p):
    B, S, D = x.shape

    def ln(v, g, b):
        mean = v.mean(-1, keepdims=True)
        var = ((v - mean) ** 2).mean(-1, keepdims=True)
        return (v - mean) / jnp.sqrt(var + LN_EPS) * g + b

    n = ln(x, p["ln1_g"], p["ln1_b"])

    def heads(v, w, b):
        y = v @ w + b
        return y.reshape(B, S, N_HEADS, D_HEAD).transpose(0, 2, 1, 3)

    q = heads(n, p["wq"], p["bq"])
    k = heads(n, p["wk"], p["bk"])
    v = heads(n, p["wv"], p["bv"])
    s = (q @ k.transpose(0, 1, 3, 2)) / math.sqrt(D_HEAD)          # (B, H, S, S)
    s = jnp.where(mask[:, None, :, :] > 0, s, -1e9)
    a = jax.nn.softmax(s, axis=-1)
    o = (a @ v).transpose(0, 2, 1, 3).reshape(B, S, D)
    x1 = x + (o @ p["wo"] + p["bo"])

    n2 = ln(x1, p["ln2_g"], p["ln2_b"])
    h = jax.nn.relu(n2 @ p["w1"] + p["b1"])
    return x1 + (h @ p["w2"] + p["b2"])


# ------------------------- parameter init -------------------------
def init_params(key):
    keys = iter(jax.random.split(key, 32))

    def dense(din, dout):
        return (jax.random.normal(next(keys), (din, dout), jnp.float32) * 0.05,
                jnp.zeros((dout,), jnp.float32))

    p = {}
    for n in ("q", "k", "v", "o"):
        p["w" + n], p["b" + n] = dense(D_MODEL, D_MODEL)
    p["w1"], p["b1"] = dense(D_MODEL, D_FF)
    p["w2"], p["b2"] = dense(D_FF, D_MODEL)
    for n in ("ln1", "ln2"):
        p[n + "_g"] = jnp.ones((D_MODEL,), jnp.float32)
        p[n + "_b"] = jnp.zeros((D_MODEL,), jnp.float32)
    return p


# ------------------------------ main ------------------------------
if __name__ == "__main__":
    root = jax.random.PRNGKey(0)
    k_par, k_x = jax.random.split(root, 2)

    params = init_params(k_par)
    packed = pack_params(params)          # one-time, outside the jitted path
    x = jax.random.normal(k_x, (BATCH, SEQ, D_MODEL), jnp.float32)
    # src-style padding mask: (B, 1, S); mask out last two tokens of batch 1.
    mask = jnp.ones((BATCH, 1, SEQ), jnp.float32).at[1, 0, -2:].set(0.0)

    fwd = jax.jit(encoder_layer)
    out = jax.block_until_ready(fwd(x, mask, packed))

    ref = encoder_layer_ref(x, mask, params)

    assert out.shape == (BATCH, SEQ, D_MODEL)
    assert bool(jnp.isfinite(out).all())
    # bf16 MXU operands + approx reciprocal => loose tolerance vs f32 reference.
    assert float(jnp.max(jnp.abs(out - ref))) < 5e-2
    print("KERNEL_OK")
</pallas_src>

<mosaic_0001>
module attributes {stable_mosaic.version = 11 : i64} {
  func.func @_encoder_layer_kernel(%arg0: memref<16x32xf32, #tpu.memory_space<vmem>>, %arg1: memref<16x16xf32, #tpu.memory_space<vmem>>, %arg2: memref<8x128xf32, #tpu.memory_space<vmem>>, %arg3: memref<32x96xbf16, #tpu.memory_space<vmem>>, %arg4: memref<32x32xbf16, #tpu.memory_space<vmem>>, %arg5: memref<32x64xbf16, #tpu.memory_space<vmem>>, %arg6: memref<64x32xbf16, #tpu.memory_space<vmem>>, %arg7: memref<16x32xf32, #tpu.memory_space<vmem>>) attributes {dimension_semantics = [], scalar_prefetch = 0 : i64, scratch_operands = 0 : i64, tpu.core_type = #tpu.core_type<tc>} {
    %c0 = arith.constant 0 : index
    %c0_0 = arith.constant 0 : index
    %0 = vector.load %arg0[%c0, %c0_0] : memref<16x32xf32, #tpu.memory_space<vmem>>, vector<16x32xf32>
    %c0_1 = arith.constant 0 : index
    %c0_2 = arith.constant 0 : index
    %1 = vector.load %arg1[%c0_1, %c0_2] : memref<16x16xf32, #tpu.memory_space<vmem>>, vector<16x16xf32>
    %c0_3 = arith.constant 0 : index
    %c0_4 = arith.constant 0 : index
    %2 = vector.load %arg2[%c0_3, %c0_4] : memref<8x128xf32, #tpu.memory_space<vmem>>, vector<1x32xf32>
    %c1 = arith.constant 1 : index
    %c0_5 = arith.constant 0 : index
    %3 = vector.load %arg2[%c1, %c0_5] : memref<8x128xf32, #tpu.memory_space<vmem>>, vector<1x32xf32>
    %c2 = arith.constant 2 : index
    %c0_6 = arith.constant 0 : index
    %4 = vector.load %arg2[%c2, %c0_6] : memref<8x128xf32, #tpu.memory_space<vmem>>, vector<1x96xf32>
    %c3 = arith.constant 3 : index
    %c0_7 = arith.constant 0 : index
    %5 = vector.load %arg2[%c3, %c0_7] : memref<8x128xf32, #tpu.memory_space<vmem>>, vector<1x32xf32>
    %c4 = arith.constant 4 : index
    %c0_8 = arith.constant 0 : index
    %6 = vector.load %arg2[%c4, %c0_8] : memref<8x128xf32, #tpu.memory_space<vmem>>, vector<1x32xf32>
    %c5 = arith.constant 5 : index
    %c0_9 = arith.constant 0 : index
    %7 = vector.load %arg2[%c5, %c0_9] : memref<8x128xf32, #tpu.memory_space<vmem>>, vector<1x32xf32>
    %c6 = arith.constant 6 : index
    %c0_10 = arith.constant 0 : index
    %8 = vector.load %arg2[%c6, %c0_10] : memref<8x128xf32, #tpu.memory_space<vmem>>, vector<1x64xf32>
    %c7 = arith.constant 7 : index
    %c0_11 = arith.constant 0 : index
    %9 = vector.load %arg2[%c7, %c0_11] : memref<8x128xf32, #tpu.memory_space<vmem>>, vector<1x32xf32>
    %cst = arith.constant dense<0.000000e+00> : vector<16xf32>
    %10 = vector.multi_reduction <add>, %0, %cst [1] : vector<16x32xf32> to vector<16xf32>
    %11 = vector.shape_cast %10 : vector<16xf32> to vector<16x1xf32>
    %cst_12 = arith.constant 3.200000e+01 : f32
    %12 = vector.broadcast %cst_12 : f32 to vector<16x1xf32>
    %13 = arith.divf %11, %12 : vector<16x1xf32>
    %14 = vector.broadcast %13 : vector<16x1xf32> to vector<16x32xf32>
    %15 = arith.subf %0, %14 : vector<16x32xf32>
    %16 = arith.mulf %15, %15 : vector<16x32xf32>
    %cst_13 = arith.constant dense<0.000000e+00> : vector<16xf32>
    %17 = vector.multi_reduction <add>, %16, %cst_13 [1] : vector<16x32xf32> to vector<16xf32>
    %18 = vector.shape_cast %17 : vector<16xf32> to vector<16x1xf32>
    %cst_14 = arith.constant 3.200000e+01 : f32
    %19 = vector.broadcast %cst_14 : f32 to vector<16x1xf32>
    %20 = arith.divf %18, %19 : vector<16x1xf32>
    %21 = vector.broadcast %13 : vector<16x1xf32> to vector<16x32xf32>
    %22 = arith.subf %0, %21 : vector<16x32xf32>
    %cst_15 = arith.constant 9.99999974E-6 : f32
    %23 = vector.broadcast %cst_15 : f32 to vector<16x1xf32>
    %24 = arith.addf %20, %23 : vector<16x1xf32>
    %25 = math.rsqrt %24 : vector<16x1xf32>
    %26 = vector.broadcast %25 : vector<16x1xf32> to vector<16x32xf32>
    %27 = arith.mulf %22, %26 : vector<16x32xf32>
    %28 = vector.broadcast %2 : vector<1x32xf32> to vector<16x32xf32>
    %29 = arith.mulf %27, %28 : vector<16x32xf32>
    %30 = vector.broadcast %3 : vector<1x32xf32> to vector<16x32xf32>
    %31 = arith.addf %29, %30 : vector<16x32xf32>
    %32 = arith.truncf %31 : vector<16x32xf32> to vector<16x32xbf16>
    %c0_16 = arith.constant 0 : index
    %c0_17 = arith.constant 0 : index
    %33 = vector.load %arg3[%c0_16, %c0_17] : memref<32x96xbf16, #tpu.memory_space<vmem>>, vector<32x96xbf16>
    %cst_18 = arith.constant dense<0.000000e+00> : vector<16x96xf32>
    %34 = tpu.matmul %32, %33, %cst_18 {dimension_numbers = #tpu.dot_dimension_numbers<[1], [0], [0], [1], [0, 0, 1, 1], [], []>} : vector<16x32xbf16>, vector<32x96xbf16>, vector<16x96xf32> -> vector<16x96xf32>
    %35 = vector.broadcast %4 : vector<1x96xf32> to vector<16x96xf32>
    %36 = arith.addf %34, %35 : vector<16x96xf32>
    %37 = arith.truncf %36 : vector<16x96xf32> to vector<16x96xbf16>
    %38 = vector.extract_strided_slice %37 {offsets = [0, 0], sizes = [16, 8], strides = [1, 1]} : vector<16x96xbf16> to vector<16x8xbf16>
    %39 = vector.extract_strided_slice %37 {offsets = [0, 32], sizes = [16, 8], strides = [1, 1]} : vector<16x96xbf16> to vector<16x8xbf16>
    %40 = vector.extract_strided_slice %37 {offsets = [0, 64], sizes = [16, 8], strides = [1, 1]} : vector<16x96xbf16> to vector<16x8xbf16>
    %cst_19 = arith.constant dense<0.000000e+00> : vector<16x16xf32>
    %41 = tpu.matmul %38, %39, %cst_19 {dimension_numbers = #tpu.dot_dimension_numbers<[1], [1], [0], [0], [0, 0, 1, 0], [], []>} : vector<16x8xbf16>, vector<16x8xbf16>, vector<16x16xf32> -> vector<16x16xf32>
    %cst_20 = arith.constant 0.353553385 : f32
    %42 = vector.broadcast %cst_20 : f32 to vector<16x16xf32>
    %43 = arith.mulf %41, %42 : vector<16x16xf32>
    %44 = arith.addf %43, %1 : vector<16x16xf32>
    %cst_21 = arith.constant dense<0xFF800000> : vector<16xf32>
    %45 = vector.multi_reduction <maximumf>, %44, %cst_21 [1] : vector<16x16xf32> to vector<16xf32>
    %46 = vector.shape_cast %45 : vector<16xf32> to vector<16x1xf32>
    %47 = vector.broadcast %46 : vector<16x1xf32> to vector<16x16xf32>
    %48 = arith.subf %44, %47 : vector<16x16xf32>
    %49 = math.exp %48 : vector<16x16xf32>
    %cst_22 = arith.constant dense<0.000000e+00> : vector<16xf32>
    %50 = vector.multi_reduction <add>, %49, %cst_22 [1] : vector<16x16xf32> to vector<16xf32>
    %51 = vector.shape_cast %50 : vector<16xf32> to vector<16x1xf32>
    %52 = tpu.reciprocal %51 {approx = true} : vector<16x1xf32> -> vector<16x1xf32>
    %53 = vector.broadcast %52 : vector<16x1xf32> to vector<16x16xf32>
    %54 = arith.mulf %49, %53 : vector<16x16xf32>
    %55 = arith.truncf %54 : vector<16x16xf32> to vector<16x16xbf16>
    %cst_23 = arith.constant dense<0.000000e+00> : vector<16x8xf32>
    %56 = tpu.matmul %55, %40, %cst_23 {dimension_numbers = #tpu.dot_dimension_numbers<[1], [0], [0], [1], [0, 0, 1, 1], [], []>} : vector<16x16xbf16>, vector<16x8xbf16>, vector<16x8xf32> -> vector<16x8xf32>
    %57 = vector.extract_strided_slice %37 {offsets = [0, 8], sizes = [16, 8], strides = [1, 1]} : vector<16x96xbf16> to vector<16x8xbf16>
    %58 = vector.extract_strided_slice %37 {offsets = [0, 40], sizes = [16, 8], strides = [1, 1]} : vector<16x96xbf16> to vector<16x8xbf16>
    %59 = vector.extract_strided_slice %37 {offsets = [0, 72], sizes = [16, 8], strides = [1, 1]} : vector<16x96xbf16> to vector<16x8xbf16>
    %cst_24 = arith.constant dense<0.000000e+00> : vector<16x16xf32>
    %60 = tpu.matmul %57, %58, %cst_24 {dimension_numbers = #tpu.dot_dimension_numbers<[1], [1], [0], [0], [0, 0, 1, 0], [], []>} : vector<16x8xbf16>, vector<16x8xbf16>, vector<16x16xf32> -> vector<16x16xf32>
    %cst_25 = arith.constant 0.353553385 : f32
    %61 = vector.broadcast %cst_25 : f32 to vector<16x16xf32>
    %62 = arith.mulf %60, %61 : vector<16x16xf32>
    %63 = arith.addf %62, %1 : vector<16x16xf32>
    %cst_26 = arith.constant dense<0xFF800000> : vector<16xf32>
    %64 = vector.multi_reduction <maximumf>, %63, %cst_26 [1] : vector<16x16xf32> to vector<16xf32>
    %65 = vector.shape_cast %64 : vector<16xf32> to vector<16x1xf32>
    %66 = vector.broadcast %65 : vector<16x1xf32> to vector<16x16xf32>
    %67 = arith.subf %63, %66 : vector<16x16xf32>
    %68 = math.exp %67 : vector<16x16xf32>
    %cst_27 = arith.constant dense<0.000000e+00> : vector<16xf32>
    %69 = vector.multi_reduction <add>, %68, %cst_27 [1] : vector<16x16xf32> to vector<16xf32>
    %70 = vector.shape_cast %69 : vector<16xf32> to vector<16x1xf32>
    %71 = tpu.reciprocal %70 {approx = true} : vector<16x1xf32> -> vector<16x1xf32>
    %72 = vector.broadcast %71 : vector<16x1xf32> to vector<16x16xf32>
    %73 = arith.mulf %68, %72 : vector<16x16xf32>
    %74 = arith.truncf %73 : vector<16x16xf32> to vector<16x16xbf16>
    %cst_28 = arith.constant dense<0.000000e+00> : vector<16x8xf32>
    %75 = tpu.matmul %74, %59, %cst_28 {dimension_numbers = #tpu.dot_dimension_numbers<[1], [0], [0], [1], [0, 0, 1, 1], [], []>} : vector<16x16xbf16>, vector<16x8xbf16>, vector<16x8xf32> -> vector<16x8xf32>
    %76 = vector.extract_strided_slice %37 {offsets = [0, 16], sizes = [16, 8], strides = [1, 1]} : vector<16x96xbf16> to vector<16x8xbf16>
    %77 = vector.extract_strided_slice %37 {offsets = [0, 48], sizes = [16, 8], strides = [1, 1]} : vector<16x96xbf16> to vector<16x8xbf16>
    %78 = vector.extract_strided_slice %37 {offsets = [0, 80], sizes = [16, 8], strides = [1, 1]} : vector<16x96xbf16> to vector<16x8xbf16>
    %cst_29 = arith.constant dense<0.000000e+00> : vector<16x16xf32>
    %79 = tpu.matmul %76, %77, %cst_29 {dimension_numbers = #tpu.dot_dimension_numbers<[1], [1], [0], [0], [0, 0, 1, 0], [], []>} : vector<16x8xbf16>, vector<16x8xbf16>, vector<16x16xf32> -> vector<16x16xf32>
    %cst_30 = arith.constant 0.353553385 : f32
    %80 = vector.broadcast %cst_30 : f32 to vector<16x16xf32>
    %81 = arith.mulf %79, %80 : vector<16x16xf32>
    %82 = arith.addf %81, %1 : vector<16x16xf32>
    %cst_31 = arith.constant dense<0xFF800000> : vector<16xf32>
    %83 = vector.multi_reduction <maximumf>, %82, %cst_31 [1] : vector<16x16xf32> to vector<16xf32>
    %84 = vector.shape_cast %83 : vector<16xf32> to vector<16x1xf32>
    %85 = vector.broadcast %84 : vector<16x1xf32> to vector<16x16xf32>
    %86 = arith.subf %82, %85 : vector<16x16xf32>
    %87 = math.exp %86 : vector<16x16xf32>
    %cst_32 = arith.constant dense<0.000000e+00> : vector<16xf32>
    %88 = vector.multi_reduction <add>, %87, %cst_32 [1] : vector<16x16xf32> to vector<16xf32>
    %89 = vector.shape_cast %88 : vector<16xf32> to vector<16x1xf32>
    %90 = tpu.reciprocal %89 {approx = true} : vector<16x1xf32> -> vector<16x1xf32>
    %91 = vector.broadcast %90 : vector<16x1xf32> to vector<16x16xf32>
    %92 = arith.mulf %87, %91 : vector<16x16xf32>
    %93 = arith.truncf %92 : vector<16x16xf32> to vector<16x16xbf16>
    %cst_33 = arith.constant dense<0.000000e+00> : vector<16x8xf32>
    %94 = tpu.matmul %93, %78, %cst_33 {dimension_numbers = #tpu.dot_dimension_numbers<[1], [0], [0], [1], [0, 0, 1, 1], [], []>} : vector<16x16xbf16>, vector<16x8xbf16>, vector<16x8xf32> -> vector<16x8xf32>
    %95 = vector.extract_strided_slice %37 {offsets = [0, 24], sizes = [16, 8], strides = [1, 1]} : vector<16x96xbf16> to vector<16x8xbf16>
    %96 = vector.extract_strided_slice %37 {offsets = [0, 56], sizes = [16, 8], strides = [1, 1]} : vector<16x96xbf16> to vector<16x8xbf16>
    %97 = vector.extract_strided_slice %37 {offsets = [0, 88], sizes = [16, 8], strides = [1, 1]} : vector<16x96xbf16> to vector<16x8xbf16>
    %cst_34 = arith.constant dense<0.000000e+00> : vector<16x16xf32>
    %98 = tpu.matmul %95, %96, %cst_34 {dimension_numbers = #tpu.dot_dimension_numbers<[1], [1], [0], [0], [0, 0, 1, 0], [], []>} : vector<16x8xbf16>, vector<16x8xbf16>, vector<16x16xf32> -> vector<16x16xf32>
    %cst_35 = arith.constant 0.353553385 : f32
    %99 = vector.broadcast %cst_35 : f32 to vector<16x16xf32>
    %100 = arith.mulf %98, %99 : vector<16x16xf32>
    %101 = arith.addf %100, %1 : vector<16x16xf32>
    %cst_36 = arith.constant dense<0xFF800000> : vector<16xf32>
    %102 = vector.multi_reduction <maximumf>, %101, %cst_36 [1] : vector<16x16xf32> to vector<16xf32>
    %103 = vector.shape_cast %102 : vector<16xf32> to vector<16x1xf32>
    %104 = vector.broadcast %103 : vector<16x1xf32> to vector<16x16xf32>
    %105 = arith.subf %101, %104 : vector<16x16xf32>
    %106 = math.exp %105 : vector<16x16xf32>
    %cst_37 = arith.constant dense<0.000000e+00> : vector<16xf32>
    %107 = vector.multi_reduction <add>, %106, %cst_37 [1] : vector<16x16xf32> to vector<16xf32>
    %108 = vector.shape_cast %107 : vector<16xf32> to vector<16x1xf32>
    %109 = tpu.reciprocal %108 {approx = true} : vector<16x1xf32> -> vector<16x1xf32>
    %110 = vector.broadcast %109 : vector<16x1xf32> to vector<16x16xf32>
    %111 = arith.mulf %106, %110 : vector<16x16xf32>
    %112 = arith.truncf %111 : vector<16x16xf32> to vector<16x16xbf16>
    %cst_38 = arith.constant dense<0.000000e+00> : vector<16x8xf32>
    %113 = tpu.matmul %112, %97, %cst_38 {dimension_numbers = #tpu.dot_dimension_numbers<[1], [0], [0], [1], [0, 0, 1, 1], [], []>} : vector<16x16xbf16>, vector<16x8xbf16>, vector<16x8xf32> -> vector<16x8xf32>
    %114 = tpu.concatenate %56, %75, %94, %113 in 1 : vector<16x8xf32>, vector<16x8xf32>, vector<16x8xf32>, vector<16x8xf32> -> vector<16x32xf32>
    %115 = arith.truncf %114 : vector<16x32xf32> to vector<16x32xbf16>
    %c0_39 = arith.constant 0 : index
    %c0_40 = arith.constant 0 : index
    %116 = vector.load %arg4[%c0_39, %c0_40] : memref<32x32xbf16, #tpu.memory_space<vmem>>, vector<32x32xbf16>
    %cst_41 = arith.constant dense<0.000000e+00> : vector<16x32xf32>
    %117 = tpu.matmul %115, %116, %cst_41 {dimension_numbers = #tpu.dot_dimension_numbers<[1], [0], [0], [1], [0, 0, 1, 1], [], []>} : vector<16x32xbf16>, vector<32x32xbf16>, vector<16x32xf32> -> vector<16x32xf32>
    %118 = vector.broadcast %5 : vector<1x32xf32> to vector<16x32xf32>
    %119 = arith.addf %117, %118 : vector<16x32xf32>
    %120 = arith.addf %0, %119 : vector<16x32xf32>
    %cst_42 = arith.constant dense<0.000000e+00> : vector<16xf32>
    %121 = vector.multi_reduction <add>, %120, %cst_42 [1] : vector<16x32xf32> to vector<16xf32>
    %122 = vector.shape_cast %121 : vector<16xf32> to vector<16x1xf32>
    %cst_43 = arith.constant 3.200000e+01 : f32
    %123 = vector.broadcast %cst_43 : f32 to vector<16x1xf32>
    %124 = arith.divf %122, %123 : vector<16x1xf32>
    %125 = vector.broadcast %124 : vector<16x1xf32> to vector<16x32xf32>
    %126 = arith.subf %120, %125 : vector<16x32xf32>
    %127 = arith.mulf %126, %126 : vector<16x32xf32>
    %cst_44 = arith.constant dense<0.000000e+00> : vector<16xf32>
    %128 = vector.multi_reduction <add>, %127, %cst_44 [1] : vector<16x32xf32> to vector<16xf32>
    %129 = vector.shape_cast %128 : vector<16xf32> to vector<16x1xf32>
    %cst_45 = arith.constant 3.200000e+01 : f32
    %130 = vector.broadcast %cst_45 : f32 to vector<16x1xf32>
    %131 = arith.divf %129, %130 : vector<16x1xf32>
    %132 = vector.broadcast %124 : vector<16x1xf32> to vector<16x32xf32>
    %133 = arith.subf %120, %132 : vector<16x32xf32>
    %cst_46 = arith.constant 9.99999974E-6 : f32
    %134 = vector.broadcast %cst_46 : f32 to vector<16x1xf32>
    %135 = arith.addf %131, %134 : vector<16x1xf32>
    %136 = math.rsqrt %135 : vector<16x1xf32>
    %137 = vector.broadcast %136 : vector<16x1xf32> to vector<16x32xf32>
    %138 = arith.mulf %133, %137 : vector<16x32xf32>
    %139 = vector.broadcast %6 : vector<1x32xf32> to vector<16x32xf32>
    %140 = arith.mulf %138, %139 : vector<16x32xf32>
    %141 = vector.broadcast %7 : vector<1x32xf32> to vector<16x32xf32>
    %142 = arith.addf %140, %141 : vector<16x32xf32>
    %143 = arith.truncf %142 : vector<16x32xf32> to vector<16x32xbf16>
    %c0_47 = arith.constant 0 : index
    %c0_48 = arith.constant 0 : index
    %144 = vector.load %arg5[%c0_47, %c0_48] : memref<32x64xbf16, #tpu.memory_space<vmem>>, vector<32x64xbf16>
    %cst_49 = arith.constant dense<0.000000e+00> : vector<16x64xf32>
    %145 = tpu.matmul %143, %144, %cst_49 {dimension_numbers = #tpu.dot_dimension_numbers<[1], [0], [0], [1], [0, 0, 1, 1], [], []>} : vector<16x32xbf16>, vector<32x64xbf16>, vector<16x64xf32> -> vector<16x64xf32>
    %146 = vector.broadcast %8 : vector<1x64xf32> to vector<16x64xf32>
    %147 = arith.addf %145, %146 : vector<16x64xf32>
    %cst_50 = arith.constant 0.000000e+00 : f32
    %148 = vector.broadcast %cst_50 : f32 to vector<16x64xf32>
    %149 = arith.maximumf %147, %148 : vector<16x64xf32>
    %150 = arith.truncf %149 : vector<16x64xf32> to vector<16x64xbf16>
    %c0_51 = arith.constant 0 : index
    %c0_52 = arith.constant 0 : index
    %151 = vector.load %arg6[%c0_51, %c0_52] : memref<64x32xbf16, #tpu.memory_space<vmem>>, vector<64x32xbf16>
    %cst_53 = arith.constant dense<0.000000e+00> : vector<16x32xf32>
    %152 = tpu.matmul %150, %151, %cst_53 {dimension_numbers = #tpu.dot_dimension_numbers<[1], [0], [0], [1], [0, 0, 1, 1], [], []>} : vector<16x64xbf16>, vector<64x32xbf16>, vector<16x32xf32> -> vector<16x32xf32>
    %153 = vector.broadcast %9 : vector<1x32xf32> to vector<16x32xf32>
    %154 = arith.addf %152, %153 : vector<16x32xf32>
    %155 = arith.addf %120, %154 : vector<16x32xf32>
    %c0_54 = arith.constant 0 : index
    %c0_55 = arith.constant 0 : index
    %156 = vector.load %arg7[%c0_54, %c0_55] : memref<16x32xf32, #tpu.memory_space<vmem>>, vector<16x32xf32>
    tpu.vector_store %arg7[%c0_54, %c0_55], %155 {strides = array<i32>} : memref<16x32xf32, #tpu.memory_space<vmem>>, vector<16x32xf32>,
    return
  }
}

</mosaic_0001>

<llo_original>
// kernel: encoder_layer.1
$region0: #{encoder_layer.1}
  #allocation0 [shape = 'u32[]', space=smem, size = 0x4, offset = 0x4, fixed_abs, tag = 'smem constant byte address 0x4 - core index']
  #allocation1 [shape = 'u32[72,128]{1,0:T(1,128)}', space=vmem, size = 0x9000, scoped, tag = 'internal scratch']
  %s0 = inlined_call_operand.vmem [shape: f32[16,32], index: 0, kind: input, shape index: {}]
  %s1 = inlined_call_operand.vmem [shape: f32[16,16], index: 1, kind: input, shape index: {}]
  %s2 = inlined_call_operand.vmem [shape: f32[8,128], index: 2, kind: input, shape index: {}]
  %s3 = inlined_call_operand.vmem [shape: bf16[32,96], index: 3, kind: input, shape index: {}]
  %s4 = inlined_call_operand.vmem [shape: bf16[32,32], index: 4, kind: input, shape index: {}]
  %s5 = inlined_call_operand.hbm [shape: bf16[32,64], index: 5, kind: input, shape index: {}]
  %s6 = inlined_call_operand.vmem [shape: bf16[64,32], index: 6, kind: input, shape index: {}]
  %s7 = inlined_call_operand.hbm [shape: f32[16,32], index: 7, kind: output, shape index: {}]
  %s8 = sld [smem:[#allocation0]]
  $region42: #{encoder_layer.1} parent=0
    _
  %s10 = ssub.s32 1, %s8
  %s11 = scalar_select 0, %s10, %s8
  $region1: #{encoder_layer.1} parent=0
    #allocation2 [shape = 'u8[8192]{0}', space=vmem, size = 0x2000, scoped, tag = 'input window, operand 5, single buffered']
    #allocation3 [shape = 's32[1]{0}', space=sflag, size = 0x4, scoped, tag = 'scoped memory for encoder_layer.1']
    #allocation4 [shape = 's32[1]{0}', space=sflag, size = 0x4, scoped, tag = 'scoped memory for encoder_layer.1']
    #allocation5 [shape = 'u8[8192]{0}', space=vmem, size = 0x2000, scoped, tag = 'output window, operand 0, single buffered']
    %12 = vsyncpa [#allocation3], 0
    %13 = vsyncpa [#allocation4], 0
    // Predicated region
    $region2: #{encoder_layer.1} parent=1 // pred_check
      _
    $region3: #{encoder_layer.1} parent=1 // pred_check_branch
      %15 = sbr.rel (0) target = $region5
    $region4: #{encoder_layer.1} parent=1 // pred_region
      _
    $region5: #{encoder_layer.1} parent=1 // pred_fallthru
      _
    // Predicated region
    $region6: #{encoder_layer.1} parent=1 // pred_check
      _
    $region7: #{encoder_layer.1} parent=1 // pred_check_branch
      %17 = sbr.rel (0) target = $region9
    $region8: #{encoder_layer.1} parent=1 // pred_region
      _
    $region9: #{encoder_layer.1} parent=1 // pred_fallthru
      _
    // Predicated region
    $region10: #{encoder_layer.1} parent=1 // pred_check
      _
    $region11: #{encoder_layer.1} parent=1 // pred_check_branch
      %19 = sbr.rel (0) target = $region13
    $region12: #{encoder_layer.1} parent=1 // pred_region
      _
    $region13: #{encoder_layer.1} parent=1 // pred_fallthru
      _
    // Predicated region
    $region14: #{encoder_layer.1} parent=1 // pred_check
      _
    $region15: #{encoder_layer.1} parent=1 // pred_check_branch
      %21 = sbr.rel (0) target = $region17
    $region16: #{encoder_layer.1} parent=1 // pred_region
      _
    $region17: #{encoder_layer.1} parent=1 // pred_fallthru
      _
    // Predicated region
    $region18: #{encoder_layer.1} parent=1 // pred_check
      _
    $region19: #{encoder_layer.1} parent=1 // pred_check_branch
      %23 = sbr.rel (0) target = $region21
    $region20: #{encoder_layer.1} parent=1 // pred_region
      _
    $region21: #{encoder_layer.1} parent=1 // pred_fallthru
      _
    // Predicated region
    $region22: #{encoder_layer.1} parent=1 // pred_check
      _
    $region23: #{encoder_layer.1} parent=1 // pred_check_branch
      %25 = sbr.rel (0) target = $region25
    $region24: #{encoder_layer.1} parent=1 // pred_region
      %27 = vsyncadd [#allocation3], 0
      %s28 = sshll.u32 %s5, 4
      %s29 = int_to_ptr.hbm [resolvable:$true] %s28
      %s30 = sshll.u32 [#allocation2], 4
      %s31 = int_to_ptr.vmem [resolvable:$true] %s30
      %36 = dma.hbm_to_vmem [thread:$0]  %s29, 256, %s31, [#allocation3], 64, 64, 4
    $region25: #{encoder_layer.1} parent=1 // pred_fallthru
      _
    // Predicated region
    $region26: #{encoder_layer.1} parent=1 // pred_check
      _
    $region27: #{encoder_layer.1} parent=1 // pred_check_branch
      %38 = sbr.rel (0) target = $region29
    $region28: #{encoder_layer.1} parent=1 // pred_region
      _
    $region29: #{encoder_layer.1} parent=1 // pred_fallthru
      _
    // Predicated region
    $region30: #{encoder_layer.1} parent=1 // pred_check
      _
    $region31: #{encoder_layer.1} parent=1 // pred_check_branch
      %40 = sbr.rel (0) target = $region33
    $region32: #{encoder_layer.1} parent=1 // pred_region
      %42 = dma.done [#allocation3], 256
    $region33: #{encoder_layer.1} parent=1 // pred_fallthru
      _
    %v44 = vld [vmem:[%s0] sm:$0xff]
    %v45 = vld [vmem:[%s0 + $0x8] sm:$0xff]
    %v46 = vld [vmem:[%s1] sm:$0xff]
    %v47 = vld [vmem:[%s1 + $0x8] sm:$0xff]
    %v48 = vld [vmem:[%s2] sm:$0x1]
    %v49 = vld [vmem:[%s2 + $0x1] sm:$0x1]
    %v50 = vld [vmem:[%s2 + $0x2] sm:$0x1]
    %v51 = vld [vmem:[%s2 + $0x3] sm:$0x1]
    %v52 = vld [vmem:[%s2 + $0x4] sm:$0x1]
    %v53 = vld [vmem:[%s2 + $0x5] sm:$0x1]
    %v54 = vld [vmem:[%s2 + $0x6] sm:$0x1]
    %v55 = vld [vmem:[%s2 + $0x7] sm:$0x1]
    %vm56 = vcmask 261120
    %v57 = vsel %vm56, %v44, 0.0
    %58 = vadd.xlane.f32.xlu0 %v57
    %v59 = vpop.xlane.xlu0 %58
    %v60 = vsel %vm56, %v45, 0.0
    %61 = vadd.xlane.f32.xlu0 %v60
    %v62 = vpop.xlane.xlu0 %61
    %v63 = vrcp.pop 32.0
    %v64 = vmul.f32 32.0, %v63
    %v65 = vsub.f32 1.0, %v64
    %v66 = vmul.f32 %v63, %v65
    %v67 = vadd.f32 %v63, %v66
    %vm68 = vweird.f32 %v63
    %v69 = vsel %vm68, %v63, %v67
    %v70 = vmul.f32 %v59, %v69
    %v71 = vmul.f32 %v62, %v69
    %v72 = vsub.f32 %v44, %v70
    %v73 = vsub.f32 %v45, %v71
    %v74 = vmul.f32 %v72, %v72
    %v75 = vmul.f32 %v73, %v73
    %v76 = vsel %vm56, %v74, 0.0
    %77 = vadd.xlane.f32.xlu0 %v76
    %v78 = vpop.xlane.xlu0 %77
    %v79 = vsel %vm56, %v75, 0.0
    %80 = vadd.xlane.f32.xlu0 %v79
    %v81 = vpop.xlane.xlu0 %80
    %v82 = vmul.f32 %v78, %v69
    %v83 = vmul.f32 %v81, %v69
    %v84 = vadd.f32 %v82, 1e-05
    %v85 = vadd.f32 %v83, 1e-05
    %v86 = vrsqrt.pop %v84
    %v87 = vmul.f32 %v86, %v84
    %v88 = vmul.f32 %v87, %v86
    %v89 = vmul.f32 0.5, %v88
    %v90 = vsub.f32 1.5, %v89
    %v91 = vmul.f32 %v86, %v90
    %vm92 = vweird.f32 %v84
    %vm93 = vweird.f32 %v86
    %vm94 = vmor %vm92, %vm93
    %v95 = vsel %vm94, %v86, %v91
    %v96 = vrsqrt.pop %v85
    %v97 = vmul.f32 %v96, %v85
    %v98 = vmul.f32 %v97, %v96
    %v99 = vmul.f32 0.5, %v98
    %v100 = vsub.f32 1.5, %v99
    %v101 = vmul.f32 %v96, %v100
    %vm102 = vweird.f32 %v85
    %vm103 = vweird.f32 %v96
    %vm104 = vmor %vm102, %vm103
    %v105 = vsel %vm104, %v96, %v101
    %v106 = vmul.f32 %v72, %v95
    %v107 = vmul.f32 %v73, %v105
    %v108 = vperm.slane %v48, 0
    %v109 = vmul.f32 %v106, %v108
    %v110 = vmul.f32 %v107, %v108
    %v111 = vperm.slane %v49, 0
    %v112 = vadd.f32 %v109, %v111
    %v113 = vadd.f32 %v110, %v111
    %v114 = vpack.c.bf16 %v113, %v112
    %v115 = vld [vmem:[%s3] sm:$0xf]
    %v116 = vld [vmem:[%s3 + $0x4] sm:$0xf]
    %v117 = vld [vmem:[%s3 + $0x8] sm:$0xf]
    %v118 = vld [vmem:[%s3 + $0xc] sm:$0xf]
    %v119 = vperm.slane %v50, 0
    %v124 = vunpack.c.l.b16 %v115
    %v125 = vunpack.c.l.b16 %v116
    %v126 = vunpack.c.l.b16 %v117
    %v127 = vunpack.c.l.b16 %v118
    %v128 = vpack.c.b16 %v125, %v124
    %v129 = vpack.c.b16 %v127, %v126
    %v133 = vsel %vm56, %v114, 0
    %135 = vmatpush.bf16.msra.mxu0 0
    %136 = vmatpush.bf16.msra.mxu0 0
    %137 = vmatpush.bf16.msra.mxu0 0
    %138 = vmatpush.bf16.msra.mxu0 0
    %139 = vmatpush.bf16.msra.mxu0 0
    %140 = vmatpush.bf16.msra.mxu0 0
    %141 = vmatpush.bf16.msra.mxu0 %v129
    %142 = vmatpush.bf16.msra.mxu0 %v128
    %143 = vmatmul.bf16.gmra.mxu0 %v133
    %v144 = vpop.f32.mrf.mxu0
    %v145 = vadd.f32 %v119, %v144
    %v146 = vpop.f32.mrf.mxu0
    %v147 = vadd.f32 %v119, %v146
    %148 = vdwg.mxu0
    %v149 = vpack.c.bf16 %v145, %v145
    %v150 = vpack.c.bf16 %v147, %v147
    %v153 = vunpack.c.l.b16 %v149
    %v154 = vunpack.c.l.b16 %v150
    %v155 = vpack.c.b16 %v154, %v153
    %156 = vrot.lane.b32.xlu0 %v155, 96
    %v157 = vpop.permute.xlu0 %156
    %vm158 = vcmask 64512
    %v160 = vsel %vm158, %v155, 0
    %v163 = vsel %vm158, %v157, 0
    %165 = vmatpush.bf16.xpose.msra.mxu0 0
    %166 = vmatpush.bf16.xpose.msra.mxu0 0
    %167 = vmatpush.bf16.xpose.msra.mxu0 0
    %168 = vmatpush.bf16.xpose.msra.mxu0 0
    %169 = vmatpush.bf16.xpose.msra.mxu0 0
    %170 = vmatpush.bf16.xpose.msra.mxu0 0
    %171 = vmatpush.bf16.xpose.msra.mxu0 0
    %172 = vmatpush.bf16.xpose.msra.mxu0 %v163
    %173 = vmatmul.bf16.gmra.mxu0 %v160
    %v174 = vpop.f32.mrf.mxu0
    %v175 = vadd.f32 0.0, %v174
    %v176 = vpop.f32.mrf.mxu0
    %v177 = vadd.f32 0.0, %v176
    %178 = vdwg.mxu0
    %v179 = vmul.f32 %v175, 0.35355338
    %v180 = vmul.f32 %v177, 0.35355338
    %v181 = vadd.f32 %v179, %v46
    %v182 = vadd.f32 %v180, %v47
    %vm183 = vcmask 130048
    %v184 = vsel %vm183, %v181, -inf
    %185 = vmax.xlane.f32.xlu0 %v184
    %v186 = vpop.xlane.xlu0 %185
    %v187 = vsel %vm183, %v182, -inf
    %188 = vmax.xlane.f32.xlu0 %v187
    %v189 = vpop.xlane.xlu0 %188
    %v190 = vsub.f32 %v181, %v186
    %v191 = vsub.f32 %v182, %v189
    %v192 = vmul.f32 %v190, 1.442695
    %v193 = vpow.pop %v192
    %v194 = vmul.f32 %v191, 1.442695
    %v195 = vpow.pop %v194
    %v196 = vsel %vm183, %v193, 0.0
    %197 = vadd.xlane.f32.xlu0 %v196
    %v198 = vpop.xlane.xlu0 %197
    %v199 = vsel %vm183, %v195, 0.0
    %200 = vadd.xlane.f32.xlu0 %v199
    %v201 = vpop.xlane.xlu0 %200
    %v202 = vrcp.pop %v198
    %v203 = vrcp.pop %v201
    %v204 = vmul.f32 %v193, %v202
    %v205 = vmul.f32 %v195, %v203
    %v206 = vpack.c.bf16 %v205, %v204
    %207 = vrot.lane.b32.xlu0 %v155, 64
    %v208 = vpop.permute.xlu0 %207
    %v211 = vsel %vm183, %v206, 0
    %213 = vmatpush.bf16.msra.mxu0 0
    %214 = vmatpush.bf16.msra.mxu0 0
    %215 = vmatpush.bf16.msra.mxu0 0
    %216 = vmatpush.bf16.msra.mxu0 0
    %217 = vmatpush.bf16.msra.mxu0 0
    %218 = vmatpush.bf16.msra.mxu0 0
    %219 = vmatpush.bf16.msra.mxu0 0
    %220 = vmatpush.bf16.msra.mxu0 %v208
    %221 = vmatmul.bf16.gmra.mxu0 %v211
    %v222 = vpop.f32.mrf.mxu0
    %v223 = vadd.f32 0.0, %v222
    %v224 = vpop.f32.mrf.mxu0
    %v225 = vadd.f32 0.0, %v224
    %226 = vdwg.mxu0
    %227 = vrot.lane.b32.xlu0 %v155, 120
    %v228 = vpop.permute.xlu0 %227
    %229 = vrot.lane.b32.xlu0 %v155, 88
    %v230 = vpop.permute.xlu0 %229
    %v232 = vsel %vm158, %v228, 0
    %v235 = vsel %vm158, %v230, 0
    %237 = vmatpush.bf16.xpose.msra.mxu0 0
    %238 = vmatpush.bf16.xpose.msra.mxu0 0
    %239 = vmatpush.bf16.xpose.msra.mxu0 0
    %240 = vmatpush.bf16.xpose.msra.mxu0 0
    %241 = vmatpush.bf16.xpose.msra.mxu0 0
    %242 = vmatpush.bf16.xpose.msra.mxu0 0
    %243 = vmatpush.bf16.xpose.msra.mxu0 0
    %244 = vmatpush.bf16.xpose.msra.mxu0 %v235
    %245 = vmatmul.bf16.gmra.mxu0 %v232
    %v246 = vpop.f32.mrf.mxu0
    %v247 = vadd.f32 0.0, %v246
    %v248 = vpop.f32.mrf.mxu0
    %v249 = vadd.f32 0.0, %v248
    %250 = vdwg.mxu0
    %v251 = vmul.f32 %v247, 0.35355338
    %v252 = vmul.f32 %v249, 0.35355338
    %v253 = vadd.f32 %v251, %v46
    %v254 = vadd.f32 %v252, %v47
    %v255 = vsel %vm183, %v253, -inf
    %256 = vmax.xlane.f32.xlu0 %v255
    %v257 = vpop.xlane.xlu0 %256
    %v258 = vsel %vm183, %v254, -inf
    %259 = vmax.xlane.f32.xlu0 %v258
    %v260 = vpop.xlane.xlu0 %259
    %v261 = vsub.f32 %v253, %v257
    %v262 = vsub.f32 %v254, %v260
    %v263 = vmul.f32 %v261, 1.442695
    %v264 = vpow.pop %v263
    %v265 = vmul.f32 %v262, 1.442695
    %v266 = vpow.pop %v265
    %v267 = vsel %vm183, %v264, 0.0
    %268 = vadd.xlane.f32.xlu0 %v267
    %v269 = vpop.xlane.xlu0 %268
    %v270 = vsel %vm183, %v266, 0.0
    %271 = vadd.xlane.f32.xlu0 %v270
    %v272 = vpop.xlane.xlu0 %271
    %v273 = vrcp.pop %v269
    %v274 = vrcp.pop %v272
    %v275 = vmul.f32 %v264, %v273
    %v276 = vmul.f32 %v266, %v274
    %v277 = vpack.c.bf16 %v276, %v275
    %278 = vrot.lane.b32.xlu0 %v155, 56
    %v279 = vpop.permute.xlu0 %278
    %v282 = vsel %vm183, %v277, 0
    %284 = vmatpush.bf16.msra.mxu0 0
    %285 = vmatpush.bf16.msra.mxu0 0
    %286 = vmatpush.bf16.msra.mxu0 0
    %287 = vmatpush.bf16.msra.mxu0 0
    %288 = vmatpush.bf16.msra.mxu0 0
    %289 = vmatpush.bf16.msra.mxu0 0
    %290 = vmatpush.bf16.msra.mxu0 0
    %291 = vmatpush.bf16.msra.mxu0 %v279
    %292 = vmatmul.bf16.gmra.mxu0 %v282
    %v293 = vpop.f32.mrf.mxu0
    %v294 = vadd.f32 0.0, %v293
    %v295 = vpop.f32.mrf.mxu0
    %v296 = vadd.f32 0.0, %v295
    %297 = vdwg.mxu0
    %298 = vrot.lane.b32.xlu0 %v155, 112
    %v299 = vpop.permute.xlu0 %298
    %300 = vrot.lane.b32.xlu0 %v155, 80
    %v301 = vpop.permute.xlu0 %300
    %v303 = vsel %vm158, %v299, 0
    %v306 = vsel %vm158, %v301, 0
    %308 = vmatpush.bf16.xpose.msra.mxu0 0
    %309 = vmatpush.bf16.xpose.msra.mxu0 0
    %310 = vmatpush.bf16.xpose.msra.mxu0 0
    %311 = vmatpush.bf16.xpose.msra.mxu0 0
    %312 = vmatpush.bf16.xpose.msra.mxu0 0
    %313 = vmatpush.bf16.xpose.msra.mxu0 0
    %314 = vmatpush.bf16.xpose.msra.mxu0 0
    %315 = vmatpush.bf16.xpose.msra.mxu0 %v306
    %316 = vmatmul.bf16.gmra.mxu0 %v303
    %v317 = vpop.f32.mrf.mxu0
    %v318 = vadd.f32 0.0, %v317
    %v319 = vpop.f32.mrf.mxu0
    %v320 = vadd.f32 0.0, %v319
    %321 = vdwg.mxu0
    %v322 = vmul.f32 %v318, 0.35355338
    %v323 = vmul.f32 %v320, 0.35355338
    %v324 = vadd.f32 %v322, %v46
    %v325 = vadd.f32 %v323, %v47
    %v326 = vsel %vm183, %v324, -inf
    %327 = vmax.xlane.f32.xlu0 %v326
    %v328 = vpop.xlane.xlu0 %327
    %v329 = vsel %vm183, %v325, -inf
    %330 = vmax.xlane.f32.xlu0 %v329
    %v331 = vpop.xlane.xlu0 %330
    %v332 = vsub.f32 %v324, %v328
    %v333 = vsub.f32 %v325, %v331
    %v334 = vmul.f32 %v332, 1.442695
    %v335 = vpow.pop %v334
    %v336 = vmul.f32 %v333, 1.442695
    %v337 = vpow.pop %v336
    %v338 = vsel %vm183, %v335, 0.0
    %339 = vadd.xlane.f32.xlu0 %v338
    %v340 = vpop.xlane.xlu0 %339
    %v341 = vsel %vm183, %v337, 0.0
    %342 = vadd.xlane.f32.xlu0 %v341
    %v343 = vpop.xlane.xlu0 %342
    %v344 = vrcp.pop %v340
    %v345 = vrcp.pop %v343
    %v346 = vmul.f32 %v335, %v344
    %v347 = vmul.f32 %v337, %v345
    %v348 = vpack.c.bf16 %v347, %v346
    %349 = vrot.lane.b32.xlu0 %v155, 48
    %v350 = vpop.permute.xlu0 %349
    %v353 = vsel %vm183, %v348, 0
    %355 = vmatpush.bf16.msra.mxu0 0
    %356 = vmatpush.bf16.msra.mxu0 0
    %357 = vmatpush.bf16.msra.mxu0 0
    %358 = vmatpush.bf16.msra.mxu0 0
    %359 = vmatpush.bf16.msra.mxu0 0
    %360 = vmatpush.bf16.msra.mxu0 0
    %361 = vmatpush.bf16.msra.mxu0 0
    %362 = vmatpush.bf16.msra.mxu0 %v350
    %363 = vmatmul.bf16.gmra.mxu0 %v353
    %v364 = vpop.f32.mrf.mxu0
    %v365 = vadd.f32 0.0, %v364
    %v366 = vpop.f32.mrf.mxu0
    %v367 = vadd.f32 0.0, %v366
    %368 = vdwg.mxu0
    %369 = vrot.lane.b32.xlu0 %v155, 104
    %v370 = vpop.permute.xlu0 %369
    %371 = vrot.lane.b32.xlu0 %v155, 72
    %v372 = vpop.permute.xlu0 %371
    %v374 = vsel %vm158, %v370, 0
    %v377 = vsel %vm158, %v372, 0
    %379 = vmatpush.bf16.xpose.msra.mxu0 0
    %380 = vmatpush.bf16.xpose.msra.mxu0 0
    %381 = vmatpush.bf16.xpose.msra.mxu0 0
    %382 = vmatpush.bf16.xpose.msra.mxu0 0
    %383 = vmatpush.bf16.xpose.msra.mxu0 0
    %384 = vmatpush.bf16.xpose.msra.mxu0 0
    %385 = vmatpush.bf16.xpose.msra.mxu0 0
    %386 = vmatpush.bf16.xpose.msra.mxu0 %v377
    %387 = vmatmul.bf16.gmra.mxu0 %v374
    %v388 = vpop.f32.mrf.mxu0
    %v389 = vadd.f32 0.0, %v388
    %v390 = vpop.f32.mrf.mxu0
    %v391 = vadd.f32 0.0, %v390
    %392 = vdwg.mxu0
    %v393 = vmul.f32 %v389, 0.35355338
    %v394 = vmul.f32 %v391, 0.35355338
    %v395 = vadd.f32 %v393, %v46
    %v396 = vadd.f32 %v394, %v47
    %v397 = vsel %vm183, %v395, -inf
    %398 = vmax.xlane.f32.xlu0 %v397
    %v399 = vpop.xlane.xlu0 %398
    %v400 = vsel %vm183, %v396, -inf
    %401 = vmax.xlane.f32.xlu0 %v400
    %v402 = vpop.xlane.xlu0 %401
    %v403 = vsub.f32 %v395, %v399
    %v404 = vsub.f32 %v396, %v402
    %v405 = vmul.f32 %v403, 1.442695
    %v406 = vpow.pop %v405
    %v407 = vmul.f32 %v404, 1.442695
    %v408 = vpow.pop %v407
    %v409 = vsel %vm183, %v406, 0.0
    %410 = vadd.xlane.f32.xlu0 %v409
    %v411 = vpop.xlane.xlu0 %410
    %v412 = vsel %vm183, %v408, 0.0
    %413 = vadd.xlane.f32.xlu0 %v412
    %v414 = vpop.xlane.xlu0 %413
    %v415 = vrcp.pop %v411
    %v416 = vrcp.pop %v414
    %v417 = vmul.f32 %v406, %v415
    %v418 = vmul.f32 %v408, %v416
    %v419 = vpack.c.bf16 %v418, %v417
    %420 = vrot.lane.b32.xlu0 %v155, 40
    %v421 = vpop.permute.xlu0 %420
    %v424 = vsel %vm183, %v419, 0
    %426 = vmatpush.bf16.msra.mxu0 0
    %427 = vmatpush.bf16.msra.mxu0 0
    %428 = vmatpush.bf16.msra.mxu0 0
    %429 = vmatpush.bf16.msra.mxu0 0
    %430 = vmatpush.bf16.msra.mxu0 0
    %431 = vmatpush.bf16.msra.mxu0 0
    %432 = vmatpush.bf16.msra.mxu0 0
    %433 = vmatpush.bf16.msra.mxu0 %v421
    %434 = vmatmul.bf16.gmra.mxu0 %v424
    %v435 = vpop.f32.mrf.mxu0
    %v436 = vadd.f32 0.0, %v435
    %v437 = vpop.f32.mrf.mxu0
    %v438 = vadd.f32 0.0, %v437
    %439 = vdwg.mxu0
    %442 = vrot.lane.b32.xlu0 %v294, 8
    %v443 = vpop.permute.xlu0 %442
    %444 = vrot.lane.b32.xlu0 %v296, 8
    %v445 = vpop.permute.xlu0 %444
    %450 = vrot.lane.b32.xlu0 %v365, 16
    %v451 = vpop.permute.xlu0 %450
    %452 = vrot.lane.b32.xlu0 %v367, 16
    %v453 = vpop.permute.xlu0 %452
    %458 = vrot.lane.b32.xlu0 %v436, 24
    %v459 = vpop.permute.xlu0 %458
    %460 = vrot.lane.b32.xlu0 %v438, 24
    %v461 = vpop.permute.xlu0 %460
    %v464 = vsel %vm158, %v223, %v443
    %v465 = vsel %vm158, %v225, %v445
    %v466 = vsel %vm183, %v464, %v451
    %v467 = vsel %vm183, %v465, %v453
    %vm468 = vcmask 195584
    %v469 = vsel %vm468, %v466, %v459
    %v470 = vsel %vm468, %v467, %v461
    %v471 = vpack.c.bf16 %v470, %v469
    %v472 = vld [vmem:[%s4] sm:$0xf]
    %v473 = vld [vmem:[%s4 + $0x4] sm:$0xf]
    %v474 = vld [vmem:[%s4 + $0x8] sm:$0xf]
    %v475 = vld [vmem:[%s4 + $0xc] sm:$0xf]
    %v476 = vperm.slane %v51, 0
    %v481 = vunpack.c.l.b16 %v472
    %v482 = vunpack.c.l.b16 %v473
    %v483 = vunpack.c.l.b16 %v474
    %v484 = vunpack.c.l.b16 %v475
    %v485 = vpack.c.b16 %v482, %v481
    %v486 = vpack.c.b16 %v484, %v483
    %v490 = vsel %vm56, %v471, 0
    %492 = vmatpush.bf16.msra.mxu0 0
    %493 = vmatpush.bf16.msra.mxu0 0
    %494 = vmatpush.bf16.msra.mxu0 0
    %495 = vmatpush.bf16.msra.mxu0 0
    %496 = vmatpush.bf16.msra.mxu0 0
    %497 = vmatpush.bf16.msra.mxu0 0
    %498 = vmatpush.bf16.msra.mxu0 %v486
    %499 = vmatpush.bf16.msra.mxu0 %v485
    %500 = vmatmul.bf16.gmra.mxu0 %v490
    %v501 = vpop.f32.mrf.mxu0
    %v502 = vadd.f32 %v476, %v501
    %v503 = vpop.f32.mrf.mxu0
    %v504 = vadd.f32 %v476, %v503
    %505 = vdwg.mxu0
    %v506 = vadd.f32 %v44, %v502
    %v507 = vadd.f32 %v45, %v504
    %v508 = vsel %vm56, %v506, 0.0
    %509 = vadd.xlane.f32.xlu0 %v508
    %v510 = vpop.xlane.xlu0 %509
    %v511 = vsel %vm56, %v507, 0.0
    %512 = vadd.xlane.f32.xlu0 %v511
    %v513 = vpop.xlane.xlu0 %512
    %v514 = vmul.f32 %v510, %v69
    %v515 = vmul.f32 %v513, %v69
    %v516 = vsub.f32 %v506, %v514
    %v517 = vsub.f32 %v507, %v515
    %v518 = vmul.f32 %v516, %v516
    %v519 = vmul.f32 %v517, %v517
    %v520 = vsel %vm56, %v518, 0.0
    %521 = vadd.xlane.f32.xlu0 %v520
    %v522 = vpop.xlane.xlu0 %521
    %v523 = vsel %vm56, %v519, 0.0
    %524 = vadd.xlane.f32.xlu0 %v523
    %v525 = vpop.xlane.xlu0 %524
    %v526 = vmul.f32 %v522, %v69
    %v527 = vmul.f32 %v525, %v69
    %v528 = vadd.f32 %v526, 1e-05
    %v529 = vadd.f32 %v527, 1e-05
    %v530 = vrsqrt.pop %v528
    %v531 = vmul.f32 %v530, %v528
    %v532 = vmul.f32 %v531, %v530
    %v533 = vmul.f32 0.5, %v532
    %v534 = vsub.f32 1.5, %v533
    %v535 = vmul.f32 %v530, %v534
    %vm536 = vweird.f32 %v528
    %vm537 = vweird.f32 %v530
    %vm538 = vmor %vm536, %vm537
    %v539 = vsel %vm538, %v530, %v535
    %v540 = vrsqrt.pop %v529
    %v541 = vmul.f32 %v540, %v529
    %v542 = vmul.f32 %v541, %v540
    %v543 = vmul.f32 0.5, %v542
    %v544 = vsub.f32 1.5, %v543
    %v545 = vmul.f32 %v540, %v544
    %vm546 = vweird.f32 %v529
    %vm547 = vweird.f32 %v540
    %vm548 = vmor %vm546, %vm547
    %v549 = vsel %vm548, %v540, %v545
    %v550 = vmul.f32 %v516, %v539
    %v551 = vmul.f32 %v517, %v549
    %v552 = vperm.slane %v52, 0
    %v553 = vmul.f32 %v550, %v552
    %v554 = vmul.f32 %v551, %v552
    %v555 = vperm.slane %v53, 0
    %v556 = vadd.f32 %v553, %v555
    %v557 = vadd.f32 %v554, %v555
    %v558 = vpack.c.bf16 %v557, %v556
    %v559 = vld [vmem:[#allocation2] sm:$0xf]
    %v560 = vld [vmem:[#allocation2 + $0x4] sm:$0xf]
    %v561 = vld [vmem:[#allocation2 + $0x8] sm:$0xf]
    %v562 = vld [vmem:[#allocation2 + $0xc] sm:$0xf]
    %v563 = vperm.slane %v54, 0
    %v568 = vunpack.c.l.b16 %v559
    %v569 = vunpack.c.l.b16 %v560
    %v570 = vunpack.c.l.b16 %v561
    %v571 = vunpack.c.l.b16 %v562
    %v572 = vpack.c.b16 %v569, %v568
    %v573 = vpack.c.b16 %v571, %v570
    %v577 = vsel %vm56, %v558, 0
    %579 = vmatpush.bf16.msra.mxu0 0
    %580 = vmatpush.bf16.msra.mxu0 0
    %581 = vmatpush.bf16.msra.mxu0 0
    %582 = vmatpush.bf16.msra.mxu0 0
    %583 = vmatpush.bf16.msra.mxu0 0
    %584 = vmatpush.bf16.msra.mxu0 0
    %585 = vmatpush.bf16.msra.mxu0 %v573
    %586 = vmatpush.bf16.msra.mxu0 %v572
    %587 = vmatmul.bf16.gmra.mxu0 %v577
    %v588 = vpop.f32.mrf.mxu0
    %v589 = vadd.f32 %v563, %v588
    %v590 = vpop.f32.mrf.mxu0
    %v591 = vadd.f32 %v563, %v590
    %592 = vdwg.mxu0
    %v593 = vmax.f32 %v589, 0.0
    %v594 = vmax.f32 %v591, 0.0
    %v595 = vpack.c.bf16 %v594, %v593
    %v596 = vld [vmem:[%s6] sm:$0xf]
    %v597 = vld [vmem:[%s6 + $0x4] sm:$0xf]
    %v598 = vld [vmem:[%s6 + $0x8] sm:$0xf]
    %v599 = vld [vmem:[%s6 + $0xc] sm:$0xf]
    %v600 = vld [vmem:[%s6 + $0x10] sm:$0xf]
    %v601 = vld [vmem:[%s6 + $0x14] sm:$0xf]
    %v602 = vld [vmem:[%s6 + $0x18] sm:$0xf]
    %v603 = vld [vmem:[%s6 + $0x1c] sm:$0xf]
    %v604 = vperm.slane %v55, 0
    %v613 = vunpack.c.l.b16 %v596
    %v614 = vunpack.c.l.b16 %v597
    %v615 = vunpack.c.l.b16 %v598
    %v616 = vunpack.c.l.b16 %v599
    %v617 = vunpack.c.l.b16 %v600
    %v618 = vunpack.c.l.b16 %v601
    %v619 = vunpack.c.l.b16 %v602
    %v620 = vunpack.c.l.b16 %v603
    %v621 = vpack.c.b16 %v614, %v613
    %v622 = vpack.c.b16 %v616, %v615
    %v623 = vpack.c.b16 %v618, %v617
    %v624 = vpack.c.b16 %v620, %v619
    %vm629 = vcmask 523264
    %v631 = vsel %vm629, %v595, 0
    %633 = vmatpush.bf16.msra.mxu0 0
    %634 = vmatpush.bf16.msra.mxu0 0
    %635 = vmatpush.bf16.msra.mxu0 0
    %636 = vmatpush.bf16.msra.mxu0 0
    %637 = vmatpush.bf16.msra.mxu0 %v624
    %638 = vmatpush.bf16.msra.mxu0 %v623
    %639 = vmatpush.bf16.msra.mxu0 %v622
    %640 = vmatpush.bf16.msra.mxu0 %v621
    %641 = vmatmul.bf16.gmra.mxu0 %v631
    %v642 = vpop.f32.mrf.mxu0
    %v643 = vadd.f32 %v604, %v642
    %v644 = vpop.f32.mrf.mxu0
    %v645 = vadd.f32 %v604, %v644
    %646 = vdwg.mxu0
    %v647 = vadd.f32 %v506, %v643
    %v648 = vadd.f32 %v507, %v645
    %649 = vst.msk [vmem:[#allocation5] sm:$0xff] %vm56, %v647
    %650 = vst.msk [vmem:[#allocation5 + $0x8] sm:$0xff] %vm56, %v648
    // Predicated region
    $region34: #{encoder_layer.1} parent=1 // pred_check
      _
    $region35: #{encoder_layer.1} parent=1 // pred_check_branch
      %652 = sbr.rel (0) target = $region37
    $region36: #{encoder_layer.1} parent=1 // pred_region
      %654 = vsyncadd [#allocation4], 0
      %s655 = sshll.u32 [#allocation5], 4
      %s656 = int_to_ptr.vmem [resolvable:$true] %s655
      %s657 = sshll.u32 %s7, 4
      %s658 = int_to_ptr.hbm [resolvable:$true] %s657
      %663 = dma.vmem_to_hbm [thread:$0]  %s656, 256, %s658, [#allocation4], 128, 128, 8
    $region37: #{encoder_layer.1} parent=1 // pred_fallthru
      _
    // Predicated region
    $region38: #{encoder_layer.1} parent=1 // pred_check
      _
    $region39: #{encoder_layer.1} parent=1 // pred_check_branch
      %665 = sbr.rel (0) target = $region41
    $region40: #{encoder_layer.1} parent=1 // pred_region
      %667 = dma.done [#allocation4], 256
    $region41: #{encoder_layer.1} parent=1 // pred_fallthru
      _
    %668 = vsyncpa [#allocation3], 1
    %669 = vsyncpa [#allocation4], 1

</llo_original>
